<compile_context>
chip_gen: v7x
topology: tpu7x:2x2x1
jax: 0.10.0
libtpu: 0.0.40
codegen_flags: <defaults>
</compile_context>

<pallas_src>
import jax
import jax.numpy as jnp
from jax.experimental import pallas as pl
from jax.experimental.pallas import tpu as pltpu


_BLOCK_BYTE_BUDGET = 4 * 1024 * 1024   # ~4 MiB per block (dtype-independent)
_VMEM_LIMIT_BYTES = 48 * 1024 * 1024   # < 64 MiB (v7x per-TC physical VMEM)


def _copy_kernel(x_ref, o_ref):
    # Elementwise pass-through of the current VMEM tile.
    o_ref[...] = x_ref[...]


def _pick_lane_width(total):
    """Largest lane-dense (multiple-of-128) width that divides `total`."""
    for c in (8192, 4096, 2048, 1024, 512, 256, 128):
        if total % c == 0:
            return c
    return None


def _pick_row_tile(rows, row_bytes):
    """Row tile within the byte budget; prefer an exact divisor of `rows`."""
    max_tr = max(8, (_BLOCK_BYTE_BUDGET // max(row_bytes, 1)) // 8 * 8)
    if rows <= max_tr:
        return rows                      # full extent: no (8,128) constraint
    for t in range(max_tr, 7, -8):       # multiples of 8, largest first
        if rows % t == 0:
            return t                     # divides rows: no ragged last block
    return max_tr                        # ragged last block (masked) fallback


def _tiled_copy(x2d):
    r, c = x2d.shape
    itemsize = jnp.dtype(x2d.dtype).itemsize
    tr = _pick_row_tile(r, c * itemsize)
    grid = (pl.cdiv(r, tr),)
    return pl.pallas_call(
        _copy_kernel,
        out_shape=jax.ShapeDtypeStruct((r, c), x2d.dtype),
        grid=grid,
        in_specs=[pl.BlockSpec((tr, c), lambda i: (i, 0))],
        out_specs=pl.BlockSpec((tr, c), lambda i: (i, 0)),
        compiler_params=pltpu.CompilerParams(
            dimension_semantics=("parallel",),
            vmem_limit_bytes=_VMEM_LIMIT_BYTES,
        ),
    )(x2d)


@jax.jit
def _identity_pallas(x):
    """Materialize a fresh copy of `x` through a tiled Pallas kernel."""
    orig_shape = x.shape
    total = 1
    for d in orig_shape:
        total *= d
    if total == 0:
        return x  # nothing to copy

    c = _pick_lane_width(total)
    if c is not None:
        # Lane-dense layout: (rows, C) with C a multiple of 128 -> full vst.
        out2d = _tiled_copy(x.reshape(total // c, c))
        return out2d.reshape(orig_shape)

    # Total element count not divisible by 128: keep the full-extent last dim
    # (masked stores) but still tile rows so VMEM usage stays bounded.
    if x.ndim >= 2 and orig_shape[-1] > 0:
        x2d = x.reshape(total // orig_shape[-1], orig_shape[-1])
    else:
        x2d = x.reshape(1, total)
    out2d = _tiled_copy(x2d)
    return out2d.reshape(orig_shape)


def model_forward(x, *, materialize: bool = False,
                  return_none_like_pytorch: bool = False):
    """Pallas equivalent of Model.forward.

    * return_none_like_pytorch=True: literal PyTorch semantics (body is
      `pass` -> returns None).
    * materialize=False (default): identity with zero HBM traffic — simply
      returns `x` (per review: never copy when no distinct buffer is needed).
    * materialize=True: identity computed through the Pallas TPU copy kernel,
      producing a distinct output buffer.
    """
    if return_none_like_pytorch:
        return None
    if not materialize:
        return x
    return _identity_pallas(x)


if __name__ == "__main__":
    key = jax.random.PRNGKey(0)
    k0, k1 = jax.random.split(key)

    # Small NCHW input consistent with a generic image-model forward.
    x = jax.random.normal(k0, (2, 4, 16, 16), dtype=jnp.float32)

    # Literal PyTorch semantics: forward returns None.
    assert model_forward(x, return_none_like_pytorch=True) is None

    # Default path: zero-copy identity (no HBM traffic).
    y_fast = model_forward(x)
    assert y_fast is x

    # Materializing path: lane-dense tiled Pallas copy kernel.
    out = model_forward(x, materialize=True)
    jax.block_until_ready(out)
    assert out.shape == x.shape and out.dtype == x.dtype
    assert bool(jnp.array_equal(out, x))

    # Exercise the non-128-divisible fallback (row-tiled, full-extent last dim).
    x2 = jax.random.normal(k1, (3, 5, 7), dtype=jnp.float32)
    out2 = model_forward(x2, materialize=True)
    jax.block_until_ready(out2)
    assert out2.shape == x2.shape and out2.dtype == x2.dtype
    assert bool(jnp.array_equal(out2, x2))

    print("KERNEL_OK")
</pallas_src>

<mosaic_0001>
module attributes {stable_mosaic.version = 11 : i64} {
  func.func @_copy_kernel(%arg0: i32, %arg1: memref<1x2048xf32, #tpu.memory_space<vmem>>, %arg2: memref<1x2048xf32, #tpu.memory_space<vmem>>) attributes {dimension_semantics = [#tpu.dimension_semantics<parallel>], iteration_bounds = array<i64: 1>, scalar_prefetch = 0 : i64, scratch_operands = 0 : i64, tpu.core_type = #tpu.core_type<tc>, window_params = [{transform_indices = @transform_0, window_bounds = array<i64: 1, 2048>}, {transform_indices = @transform_1, window_bounds = array<i64: 1, 2048>}]} {
    %c0 = arith.constant 0 : index
    %c0_0 = arith.constant 0 : index
    %0 = vector.load %arg1[%c0, %c0_0] : memref<1x2048xf32, #tpu.memory_space<vmem>>, vector<1x2048xf32>
    %c0_1 = arith.constant 0 : index
    %c0_2 = arith.constant 0 : index
    %1 = vector.load %arg2[%c0_1, %c0_2] : memref<1x2048xf32, #tpu.memory_space<vmem>>, vector<1x2048xf32>
    tpu.vector_store %arg2[%c0_1, %c0_2], %0 {strides = array<i32>} : memref<1x2048xf32, #tpu.memory_space<vmem>>, vector<1x2048xf32>,
    return
  }
  func.func @transform_0(%arg0: i32) -> (i32, i32) {
    %c0_i32 = arith.constant 0 : i32
    %c0_i32_0 = arith.constant 0 : i32
    return %arg0, %c0_i32 : i32, i32
  }
  func.func @transform_1(%arg0: i32) -> (i32, i32) {
    %c0_i32 = arith.constant 0 : i32
    %c0_i32_0 = arith.constant 0 : i32
    return %arg0, %c0_i32 : i32, i32
  }
}

</mosaic_0001>

<llo_original>
// kernel: _identity_pallas.1
$region0: #{_identity_pallas.1}
  #allocation0 [shape = 'u32[]', space=smem, size = 0x4, offset = 0x4, fixed_abs, tag = 'smem constant byte address 0x4 - core index']
  #allocation1 [shape = 'u32[144,128]{1,0:T(1,128)}', space=vmem, size = 0x12000, scoped, tag = 'internal scratch']
  %s0 = inlined_call_operand.vmem [shape: f32[1,2048], index: 0, kind: input, shape index: {}]
  %s1 = inlined_call_operand.vmem [shape: f32[1,2048], index: 1, kind: output, shape index: {}]
  %s2 = sld [smem:[#allocation0]]
  $region14: #{_identity_pallas.1} parent=0
    _
  %s4 = ssub.s32 1, %s2
  %s5 = scalar_select 0, %s4, %s2
  // Predicated region
  $region2: #{_identity_pallas.1} parent=0 // pred_check
    _
  $region3: #{_identity_pallas.1} parent=0 // pred_check_branch
    %7 = sbr.rel (0) target = $region5
  $region4: #{_identity_pallas.1} parent=0 // pred_region
    _
  $region5: #{_identity_pallas.1} parent=0 // pred_fallthru
    _
  %v8 = vld [vmem:[%s0] sm:$0xff]
  %v9 = vld [vmem:[%s0 + $0x8] sm:$0xff]
  %10 = vst [vmem:[%s1] sm:$0xff] %v8
  %11 = vst [vmem:[%s1 + $0x8] sm:$0xff] %v9
  // Predicated region
  $region6: #{_identity_pallas.1} parent=0 // pred_check
    _
  $region7: #{_identity_pallas.1} parent=0 // pred_check_branch
    %13 = sbr.rel (0) target = $region9
  $region8: #{_identity_pallas.1} parent=0 // pred_region
    _
  $region9: #{_identity_pallas.1} parent=0 // pred_fallthru
    _
  // Predicated region
  $region10: #{_identity_pallas.1} parent=0 // pred_check
    _
  $region11: #{_identity_pallas.1} parent=0 // pred_check_branch
    %15 = sbr.rel (0) target = $region13
  $region12: #{_identity_pallas.1} parent=0 // pred_region
    _
  $region13: #{_identity_pallas.1} parent=0 // pred_fallthru
    _

</llo_original>
